<compile_context>
chip_gen: v5e
topology: v5e:2x2
jax: 0.10.0
libtpu: 0.0.40
codegen_flags: <defaults>
</compile_context>

<pallas_src>
import jax
import jax.numpy as jnp
from jax.experimental import pallas as pl
from jax.experimental.pallas import tpu as pltpu

_LANES = 128


def _mdecoder_scale_kernel(wb_ref, t_ref, scale_ref):
    # wb_ref: SMEM f32[2] = [weight, bias] of the Linear(1,1).
    w = wb_ref[0]
    b = wb_ref[1]
    # scale = exp(logsigma) = exp(t * w + b)
    scale_ref[...] = jnp.exp(t_ref[...] * w + b)


def mdecoder_forward(treatment, weight, bias, *, tile_rows=1024):
    """treatment: [N, 1] float32; weight/bias: scalars of the Linear(1,1).

    Returns (mu, scale) — the parameters of Normal(loc=mu, scale=scale).
    mu is the treatment itself (identity), returned directly with no extra
    HBM write stream.
    """
    n, f = treatment.shape
    assert f == 1, "MDecoder expects a single treatment feature"
    treatment = treatment.astype(jnp.float32)

    # ---- lane-dense view: [N, 1] -> [rows, 128] ----
    rows = -(-n // _LANES)                       # ceil(N / 128)
    aligned = (n % _LANES) == 0

    t_flat = treatment.reshape(-1)
    if aligned:
        # Free metadata reshape — no extra HBM pass.
        t2d = t_flat.reshape(rows, _LANES)
    else:
        # Minimal pad only for ragged N (one extra pass on the ragged case).
        t2d = jnp.pad(t_flat, (0, rows * _LANES - n)).reshape(rows, _LANES)

    # ---- tile selection ----
    if rows < 8:
        # Block row-dim must be a multiple of 8 OR equal the full dim.
        tile_rows_eff = rows
    else:
        # Aim for >= 2 grid steps when possible (v7x: 2 TensorCores share HBM),
        # capped at the requested tile size; keep a multiple of 8.
        half_rounded = ((((rows + 1) // 2) + 7) // 8) * 8
        tile_rows_eff = max(8, min(tile_rows, half_rounded))
        tile_rows_eff = (tile_rows_eff // 8) * 8

    wb = jnp.stack(
        [jnp.asarray(weight, jnp.float32).reshape(()),
         jnp.asarray(bias, jnp.float32).reshape(())]
    )

    grid = (pl.cdiv(rows, tile_rows_eff),)       # ragged last block is masked
    scale2d = pl.pallas_call(
        _mdecoder_scale_kernel,
        out_shape=jax.ShapeDtypeStruct((rows, _LANES), jnp.float32),
        grid=grid,
        in_specs=[
            pl.BlockSpec(memory_space=pltpu.SMEM),                     # [w, b]
            pl.BlockSpec((tile_rows_eff, _LANES), lambda i: (i, 0)),   # t tile
        ],
        out_specs=pl.BlockSpec((tile_rows_eff, _LANES), lambda i: (i, 0)),
        compiler_params=pltpu.CompilerParams(
            dimension_semantics=("parallel",),
        ),
    )(wb, t2d)

    if aligned:
        scale = scale2d.reshape(n, 1)            # free metadata reshape
    else:
        scale = scale2d.reshape(-1)[:n].reshape(n, 1)

    mu = treatment                               # identity: no kernel write
    return mu, scale


if __name__ == "__main__":
    key = jax.random.PRNGKey(0)
    k_t, k_w, k_b, k_t2 = jax.random.split(key, 4)

    # Deterministic synthetic parameters for nn.Linear(1, 1): weight (1,1), bias (1,)
    weight = jax.random.uniform(k_w, (), jnp.float32, minval=-1.0, maxval=1.0)
    bias = jax.random.uniform(k_b, (), jnp.float32, minval=-1.0, maxval=1.0)

    ok = True

    # Lane-aligned path (zero-copy view): N = 128
    n = 128
    treatment = jax.random.normal(k_t, (n, 1), jnp.float32)
    mu, scale = mdecoder_forward(treatment, weight, bias)
    mu = jax.block_until_ready(mu)
    scale = jax.block_until_ready(scale)
    ref_scale = jnp.exp(treatment * weight + bias)
    ok &= mu.shape == (n, 1) and scale.shape == (n, 1)
    ok &= bool(jnp.allclose(mu, treatment, atol=1e-6))
    ok &= bool(jnp.allclose(scale, ref_scale, atol=1e-5, rtol=1e-5))

    # Ragged path (minimal pad + slice): N = 200
    n2 = 200
    treatment2 = jax.random.normal(k_t2, (n2, 1), jnp.float32)
    mu2, scale2 = mdecoder_forward(treatment2, weight, bias)
    mu2 = jax.block_until_ready(mu2)
    scale2 = jax.block_until_ready(scale2)
    ref_scale2 = jnp.exp(treatment2 * weight + bias)
    ok &= mu2.shape == (n2, 1) and scale2.shape == (n2, 1)
    ok &= bool(jnp.allclose(mu2, treatment2, atol=1e-6))
    ok &= bool(jnp.allclose(scale2, ref_scale2, atol=1e-5, rtol=1e-5))

    assert ok
    print("KERNEL_OK")
</pallas_src>

<mosaic_0001>
module attributes {stable_mosaic.version = 11 : i64} {
  func.func @_mdecoder_scale_kernel(%arg0: i32, %arg1: memref<2xf32, #tpu.memory_space<smem>>, %arg2: memref<1x128xf32, #tpu.memory_space<vmem>>, %arg3: memref<1x128xf32, #tpu.memory_space<vmem>>) attributes {dimension_semantics = [#tpu.dimension_semantics<parallel>], iteration_bounds = array<i64: 1>, scalar_prefetch = 0 : i64, scratch_operands = 0 : i64, tpu.core_type = #tpu.core_type<tc>, window_params = [{transform_indices = @transform_0, window_bounds = array<i64: 2>}, {transform_indices = @transform_1, window_bounds = array<i64: 1, 128>}, {transform_indices = @transform_2, window_bounds = array<i64: 1, 128>}]} {
    %c0 = arith.constant 0 : index
    %0 = memref.load %arg1[%c0] : memref<2xf32, #tpu.memory_space<smem>>
    %c1 = arith.constant 1 : index
    %1 = memref.load %arg1[%c1] : memref<2xf32, #tpu.memory_space<smem>>
    %c0_0 = arith.constant 0 : index
    %c0_1 = arith.constant 0 : index
    %2 = vector.load %arg2[%c0_0, %c0_1] : memref<1x128xf32, #tpu.memory_space<vmem>>, vector<1x128xf32>
    %3 = vector.broadcast %0 : f32 to vector<1x128xf32>
    %4 = arith.mulf %2, %3 : vector<1x128xf32>
    %5 = vector.broadcast %1 : f32 to vector<1x128xf32>
    %6 = arith.addf %4, %5 : vector<1x128xf32>
    %7 = math.exp %6 : vector<1x128xf32>
    %c0_2 = arith.constant 0 : index
    %c0_3 = arith.constant 0 : index
    %8 = vector.load %arg3[%c0_2, %c0_3] : memref<1x128xf32, #tpu.memory_space<vmem>>, vector<1x128xf32>
    tpu.vector_store %arg3[%c0_2, %c0_3], %7 {strides = array<i32>} : memref<1x128xf32, #tpu.memory_space<vmem>>, vector<1x128xf32>,
    return
  }
  func.func @transform_0(%arg0: i32) -> i32 {
    %c0_i32 = arith.constant 0 : i32
    %c0_i32_0 = arith.constant 0 : i32
    return %c0_i32 : i32
  }
  func.func @transform_1(%arg0: i32) -> (i32, i32) {
    %c0_i32 = arith.constant 0 : i32
    %c0_i32_0 = arith.constant 0 : i32
    return %arg0, %c0_i32 : i32, i32
  }
  func.func @transform_2(%arg0: i32) -> (i32, i32) {
    %c0_i32 = arith.constant 0 : i32
    %c0_i32_0 = arith.constant 0 : i32
    return %arg0, %c0_i32 : i32, i32
  }
}

</mosaic_0001>

<llo_original>
// kernel: tpu_custom_call.1
$region0: #{tpu_custom_call.1}
  #allocation0 [shape = 'u32[]', space=smem, size = 0x4, offset = 0x4, fixed_abs, tag = 'smem constant byte address 0x4 - core index']
  #allocation1 [shape = 'u32[72,128]{1,0:T(1,128)}', space=vmem, size = 0x9000, scoped, tag = 'internal scratch']
  %s0 = inlined_call_operand.hbm [shape: f32[2], index: 0, kind: input, shape index: {}]
  %s1 = inlined_call_operand.hbm [shape: f32[1,128], index: 1, kind: input, shape index: {}]
  %s2 = inlined_call_operand.hbm [shape: f32[1,128], index: 2, kind: output, shape index: {}]
  %s3 = sld [smem:[#allocation0]]
  $region26: #{tpu_custom_call.1} parent=0
    _
  %s5 = ssub.s32 1, %s3
  %s6 = scalar_select 0, %s5, %s3
  $region1: #{tpu_custom_call.1} parent=0
    #allocation2 [shape = 'u8[512]{0}', space=smem, size = 0x200, scoped, tag = 'input window, operand 0, single buffered']
    #allocation3 [shape = 's32[1]{0}', space=sflag, size = 0x4, scoped, tag = 'scoped memory for tpu_custom_call.1']
    #allocation4 [shape = 's32[1]{0}', space=sflag, size = 0x4, scoped, tag = 'scoped memory for tpu_custom_call.1']
    #allocation5 [shape = 's32[1]{0}', space=sflag, size = 0x4, scoped, tag = 'scoped memory for tpu_custom_call.1']
    #allocation6 [shape = 'u8[512]{0}', space=vmem, size = 0x400, scoped, tag = 'input window, operand 1, single buffered']
    #allocation7 [shape = 'u8[512]{0}', space=vmem, size = 0x400, scoped, tag = 'output window, operand 0, single buffered']
    %7 = vsyncpa [#allocation5], 0
    %8 = vsyncpa [#allocation3], 0
    %9 = vsyncpa [#allocation4], 0
    // Predicated region
    $region2: #{tpu_custom_call.1} parent=1 // pred_check
      _
    $region3: #{tpu_custom_call.1} parent=1 // pred_check_branch
      %11 = sbr.rel (0) target = $region5
    $region4: #{tpu_custom_call.1} parent=1 // pred_region
      %13 = vsyncadd [#allocation5], 0
      %s15 = sshll.u32 %s0, 4
      %s16 = int_to_ptr.hbm [resolvable:$true] %s15
      %18 = dma.hbm_to_smem %s16, 16, [#allocation2], [#allocation5]
    $region5: #{tpu_custom_call.1} parent=1 // pred_fallthru
      _
    // Predicated region
    $region6: #{tpu_custom_call.1} parent=1 // pred_check
      _
    $region7: #{tpu_custom_call.1} parent=1 // pred_check_branch
      %20 = sbr.rel (0) target = $region9
    $region8: #{tpu_custom_call.1} parent=1 // pred_region
      %22 = vsyncadd [#allocation3], 0
      %s24 = sshll.u32 %s1, 4
      %s25 = int_to_ptr.hbm [resolvable:$true] %s24
      %s26 = sshll.u32 [#allocation6], 4
      %s27 = int_to_ptr.vmem [resolvable:$true] %s26
      %29 = dma.hbm_to_vmem [thread:$0]  %s25, 16, %s27, [#allocation3]
    $region9: #{tpu_custom_call.1} parent=1 // pred_fallthru
      _
    // Predicated region
    $region10: #{tpu_custom_call.1} parent=1 // pred_check
      _
    $region11: #{tpu_custom_call.1} parent=1 // pred_check_branch
      %31 = sbr.rel (0) target = $region13
    $region12: #{tpu_custom_call.1} parent=1 // pred_region
      %33 = dma.done [#allocation5], 16
    $region13: #{tpu_custom_call.1} parent=1 // pred_fallthru
      _
    // Predicated region
    $region14: #{tpu_custom_call.1} parent=1 // pred_check
      _
    $region15: #{tpu_custom_call.1} parent=1 // pred_check_branch
      %35 = sbr.rel (0) target = $region17
    $region16: #{tpu_custom_call.1} parent=1 // pred_region
      %37 = dma.done [#allocation3], 16
    $region17: #{tpu_custom_call.1} parent=1 // pred_fallthru
      _
    %38 = sfence
    %s39 = sld [smem:[#allocation2]]
    %s40 = sld [smem:[#allocation2 + $0x1]]
    %v41 = vld [vmem:[#allocation6] sm:$0x1]
    %v42 = vstv %s39
    %v43 = vmul.f32 %v41, %v42
    %v44 = vstv %s40
    %v45 = vadd.f32 %v43, %v44
    %v46 = vmul.f32 %v45, 1.442695
    %v47 = vpow.pop %v46
    %48 = vst [vmem:[#allocation7] sm:$0x1] %v47
    // Predicated region
    $region18: #{tpu_custom_call.1} parent=1 // pred_check
      _
    $region19: #{tpu_custom_call.1} parent=1 // pred_check_branch
      %50 = sbr.rel (0) target = $region21
    $region20: #{tpu_custom_call.1} parent=1 // pred_region
      %52 = vsyncadd [#allocation4], 0
      %s54 = sshll.u32 [#allocation7], 4
      %s55 = int_to_ptr.vmem [resolvable:$true] %s54
      %s56 = sshll.u32 %s2, 4
      %s57 = int_to_ptr.hbm [resolvable:$true] %s56
      %59 = dma.vmem_to_hbm [thread:$0]  %s55, 16, %s57, [#allocation4]
    $region21: #{tpu_custom_call.1} parent=1 // pred_fallthru
      _
    // Predicated region
    $region22: #{tpu_custom_call.1} parent=1 // pred_check
      _
    $region23: #{tpu_custom_call.1} parent=1 // pred_check_branch
      %61 = sbr.rel (0) target = $region25
    $region24: #{tpu_custom_call.1} parent=1 // pred_region
      %63 = dma.done [#allocation4], 16
    $region25: #{tpu_custom_call.1} parent=1 // pred_fallthru
      _
    %64 = vsyncpa [#allocation3], 1
    %65 = vsyncpa [#allocation4], 1
    %66 = vsyncpa [#allocation5], 1

</llo_original>
